<compile_context>
chip_gen: v5e
topology: v5e:2x2
jax: 0.10.0
libtpu: 0.0.40
codegen_flags: <defaults>
</compile_context>

<pallas_src>
import jax
import jax.numpy as jnp
from jax.experimental import pallas as pl
from jax.experimental.pallas import tpu as pltpu

EPS = 1e-5  # nn.LayerNorm default


def _round_up(x, m):
    return (x + m - 1) // m * m


def _cdiv(a, b):
    return (a + b - 1) // b


def _vmem_capacity_bytes():
    # Hardware introspection only; a failure here never hides kernel errors,
    # it just falls back to the most conservative (v7x-sized) budget.
    try:
        cap = getattr(pltpu.get_tpu_info(), "vmem_capacity_bytes", None)
        if cap:
            return int(cap)
    except Exception:
        pass
    return 64 * 1024 * 1024


def _layernorm_f32(x, gamma, beta):
    x = x.astype(jnp.float32)
    mean = jnp.mean(x, axis=-1, keepdims=True)
    cen = x - mean
    var = jnp.mean(cen * cen, axis=-1, keepdims=True)
    return (cen * jax.lax.rsqrt(var + EPS)) * gamma.astype(jnp.float32) \
        + beta.astype(jnp.float32)


# --------------------------------------------------------------------------- #
# Kernel 1: resident-W path.  grid = (n_row,), W / gamma / beta / bias have a
# constant block index, so each is fetched from HBM once and stays in VMEM for
# the whole grid.  LayerNorm feeds the MXU directly (no scratch round-trip).
# --------------------------------------------------------------------------- #
def _prenorm_resident_kernel(x_ref, gamma_ref, beta_ref, w_ref, bias_ref, o_ref):
    y = _layernorm_f32(x_ref[...], gamma_ref[...], beta_ref[...])
    out = jnp.dot(y.astype(w_ref.dtype), w_ref[...],
                  preferred_element_type=jnp.float32)
    o_ref[...] = (out + bias_ref[...].astype(jnp.float32)).astype(o_ref.dtype)
    # TODO(synk): on this path the LayerNorm still precedes the matmul inside
    # each grid step; cross-step LN/MXU overlap is implemented only for the
    # streaming kernel below.


# --------------------------------------------------------------------------- #
# Kernel 2: streaming-W path.  grid = (2, n_row_c, n_col) =
# (virtual core, per-core row tile, weight column tile).
# y_ref is a (2, tm, D) ping-pong scratch holding LayerNorm(x) in matmul dtype.
# Correctness relies on the row/column axes being iterated sequentially per
# core (they are "arbitrary"); only the leading size-2 core axis is "parallel",
# so a megacore split can only fall on a core-axis boundary and each core
# recomputes the LayerNorm of its first row tile at (r == 0, j == 0).
# --------------------------------------------------------------------------- #
def _prenorm_stream_kernel(x_ref, gamma_ref, beta_ref, w_ref, bias_ref, o_ref,
                           y_ref):
    r = pl.program_id(1)
    j = pl.program_id(2)
    n_row_c = pl.num_programs(1)
    n_col = pl.num_programs(2)
    slot = r % 2

    def _ln_value():
        y = _layernorm_f32(x_ref[...], gamma_ref[...], beta_ref[...])
        return y.astype(y_ref.dtype)

    # First row tile handled by this core: nothing prefetched its LayerNorm.
    @pl.when((r == 0) & (j == 0))
    def _():
        y_ref[0] = _ln_value()

    out = jnp.dot(y_ref[slot], w_ref[...], preferred_element_type=jnp.float32)
    o_ref[...] = (out + bias_ref[...].astype(jnp.float32)).astype(o_ref.dtype)

    # Lookahead: on the last column step x_ref already holds row tile r+1 (see
    # the x index_map); LayerNorm it into the other slot so the VPU work
    # overlaps with this step's MXU matmul instead of gating the next row tile.
    @pl.when((j == n_col - 1) & (r + 1 < n_row_c))
    def _():
        yv = _ln_value()

        @pl.when(slot == 0)
        def _():
            y_ref[1] = yv

        @pl.when(slot == 1)
        def _():
            y_ref[0] = yv


# --------------------------------------------------------------------------- #
# Wrapper
# --------------------------------------------------------------------------- #
def prenorm_forward(x, gamma, beta, w, b, *, matmul_dtype=jnp.bfloat16,
                    tm=None, tn=None):
    """x: (B, S, D).  Returns fn(LayerNorm(x)) with fn = Linear(D, D).

    `tm` / `tn` are optional overrides (used by the self-test to force the
    streaming path); by default both are chosen automatically.
    """
    B, S, D = x.shape
    rows = B * S
    out_dtype = x.dtype

    isz_x = jnp.dtype(x.dtype).itemsize
    isz_o = jnp.dtype(out_dtype).itemsize
    isz_w = jnp.dtype(matmul_dtype).itemsize

    # ---- per-generation VMEM budget (items 3 / 4) ---------------------------
    vmem_cap = _vmem_capacity_bytes()            # 64 MiB v7x, 128 MiB v5e/v6e
    big_vmem = vmem_cap >= 100 * 1024 * 1024
    vmem_budget = (vmem_cap * 3) // 4            # ~48 MiB v7x, ~96 MiB v5e/v6e

    const_bytes = 8 * D * 4                      # gamma/beta/bias (double-buffered)

    def resident_vmem(tm_):
        return (2 * tm_ * D * isz_x              # x tile (double-buffered)
                + 2 * D * D * isz_w              # whole W.T (2 buffers, 1 HBM fetch)
                + 2 * tm_ * D * isz_o            # output tile
                + const_bytes)

    def stream_vmem(tm_, tn_):
        return (2 * tm_ * D * isz_x              # x tile
                + 2 * D * tn_ * isz_w            # W.T column block
                + 2 * tm_ * tn_ * isz_o          # output tile
                + 2 * tm_ * D * isz_w            # LayerNorm ping-pong scratch
                + const_bytes)

    # keep >= 2 row tiles so the "parallel" axis can feed both v7x TCs (item 5)
    row_split_cap = max(8, _round_up(_cdiv(rows, 2), 8))

    # streaming column-tile candidate (item 7: 512 -> 256 -> 128 fallback)
    stream_tn = None
    if D % 128 == 0:
        cand = next(t for t in (512, 256, 128) if D % t == 0)
        if D // cand >= 2:
            stream_tn = cand
    if tn is not None:
        if tn == D:
            stream_tn = None
        else:
            assert D % tn == 0 and tn % 128 == 0 and D // tn >= 2, \
                "tn must be a lane-aligned proper divisor of D"
            stream_tn = int(tn)

    # resident-W decision (item 1): keep the whole weight in VMEM when it fits
    resident_tm = None
    for cand in (min(512, row_split_cap), min(256, row_split_cap)):
        if resident_vmem(cand) <= vmem_budget:
            resident_tm = cand
            break
    if tn is not None:
        use_resident = (tn == D)
    else:
        use_resident = (resident_tm is not None) or (stream_tn is None)

    # ---- operands -----------------------------------------------------------
    x2d = x.reshape(rows, D)
    gamma2d = gamma.reshape(1, D).astype(jnp.float32)
    beta2d = beta.reshape(1, D).astype(jnp.float32)
    bias2d = b.reshape(1, D).astype(jnp.float32)
    w_t = w.T.astype(matmul_dtype)               # (D_in, D_out): LN(x) @ w_t

    if use_resident:
        blk_m = resident_tm if resident_tm is not None else min(256, row_split_cap)
        if tm is not None:
            blk_m = max(8, _round_up(int(tm), 8))
        rows_p = _round_up(rows, blk_m)
        n_row = rows_p // blk_m

        grid = (n_row,)
        dims = ("parallel",)
        in_specs = [
            pl.BlockSpec((blk_m, D), lambda i: (i, 0)),      # x row tile
            pl.BlockSpec((1, D), lambda i: (0, 0)),          # gamma
            pl.BlockSpec((1, D), lambda i: (0, 0)),          # beta
            pl.BlockSpec((D, D), lambda i: (0, 0)),          # resident W.T
            pl.BlockSpec((1, D), lambda i: (0, 0)),          # bias
        ]
        out_specs = pl.BlockSpec((blk_m, D), lambda i: (i, 0))
        scratch_shapes = ()
        kernel = _prenorm_resident_kernel
        w_hbm_reads = 1
        vmem_est = resident_vmem(blk_m)
    else:
        blk_n = stream_tn
        n_col = D // blk_n
        tm_target = 1024 if big_vmem else 512              # item 2
        blk_m = min(tm_target, row_split_cap)
        if tm is not None:
            blk_m = max(8, _round_up(int(tm), 8))
        while stream_vmem(blk_m, blk_n) > vmem_budget and blk_m > 256:
            blk_m = max(256, _round_up(blk_m // 2, 8))

        n_row_total = _cdiv(rows, blk_m)
        n_cores = 2 if n_row_total >= 2 else 1
        n_row_c = _cdiv(n_row_total, n_cores)
        rows_p = n_cores * n_row_c * blk_m
        nrc, ncol = n_row_c, n_col

        def x_map(c, r, j):
            # At the last column step, present the NEXT row tile so the kernel
            # can LayerNorm it while the MXU chews on the current one.  Each x
            # block is still fetched from HBM exactly once per core.
            cur = c * nrc + r
            nxt = c * nrc + jnp.minimum(r + 1, nrc - 1)
            return jnp.where(j == ncol - 1, nxt, cur), 0

        grid = (n_cores, n_row_c, n_col)
        dims = ("parallel", "arbitrary", "arbitrary")
        in_specs = [
            pl.BlockSpec((blk_m, D), x_map),                           # x (lookahead)
            pl.BlockSpec((1, D), lambda c, r, j: (0, 0)),              # gamma
            pl.BlockSpec((1, D), lambda c, r, j: (0, 0)),              # beta
            pl.BlockSpec((D, blk_n), lambda c, r, j: (0, j)),          # W.T column blk
            pl.BlockSpec((1, blk_n), lambda c, r, j: (0, j)),          # bias column blk
        ]
        out_specs = pl.BlockSpec((blk_m, blk_n),
                                 lambda c, r, j: (c * nrc + r, j))
        scratch_shapes = (pltpu.VMEM((2, blk_m, D), matmul_dtype),)
        kernel = _prenorm_stream_kernel
        w_hbm_reads = n_cores * n_row_c
        vmem_est = stream_vmem(blk_m, blk_n)

    if rows_p != rows:
        x2d = jnp.pad(x2d, ((0, rows_p - rows), (0, 0)))

    # ---- compiler hints (items 3 / 4 / 9) -----------------------------------
    vmem_limit = max(32 * 1024 * 1024, int(vmem_est * 1.5))
    vmem_limit = int(min(vmem_limit,
                         vmem_budget + 8 * 1024 * 1024,
                         vmem_cap - 8 * 1024 * 1024))

    cost = pl.CostEstimate(
        flops=2 * rows_p * D * D + 10 * rows_p * D,
        transcendentals=rows_p,
        bytes_accessed=int(rows_p * D * isz_x + rows_p * D * isz_o
                           + w_hbm_reads * D * D * isz_w + 3 * D * 4),
    )

    out2d = pl.pallas_call(
        kernel,
        out_shape=jax.ShapeDtypeStruct((rows_p, D), out_dtype),
        grid_spec=pltpu.PrefetchScalarGridSpec(
            num_scalar_prefetch=0,
            grid=grid,
            in_specs=in_specs,
            out_specs=out_specs,
            scratch_shapes=scratch_shapes,
        ),
        compiler_params=pltpu.CompilerParams(
            dimension_semantics=dims,
            vmem_limit_bytes=vmem_limit),
        cost_estimate=cost,
    )(x2d, gamma2d, beta2d, w_t, bias2d)

    return out2d[:rows].reshape(B, S, D)


def reference_forward(x, gamma, beta, w, b):
    xf = x.astype(jnp.float32)
    mean = jnp.mean(xf, axis=-1, keepdims=True)
    var = jnp.mean((xf - mean) ** 2, axis=-1, keepdims=True)
    xhat = (xf - mean) / jnp.sqrt(var + EPS)
    y = xhat * gamma + beta
    return (y @ w.T + b).astype(x.dtype)


if __name__ == "__main__":
    key = jax.random.PRNGKey(0)
    k1, k2, k3, k4, k5, k6 = jax.random.split(key, 6)

    # ---- small case: resident-W fast path (D x D weight trivially fits) -----
    B, S, D = 2, 8, 128
    x = jax.random.normal(k1, (B, S, D), dtype=jnp.float32)
    gamma = 1.0 + 0.01 * jax.random.normal(k2, (D,), dtype=jnp.float32)
    beta = 0.01 * jax.random.normal(k3, (D,), dtype=jnp.float32)
    w = jax.random.normal(k4, (D, D), dtype=jnp.float32) / jnp.sqrt(D)
    b = 0.01 * jax.random.normal(k5, (D,), dtype=jnp.float32)

    ref = reference_forward(x, gamma, beta, w, b)

    out = jax.block_until_ready(
        prenorm_forward(x, gamma, beta, w, b, matmul_dtype=jnp.bfloat16))
    assert out.shape == (B, S, D)
    assert bool(jnp.allclose(out, ref, atol=5e-2, rtol=5e-2)), \
        "resident bf16 kernel mismatch vs reference"

    out_f32 = jax.block_until_ready(
        prenorm_forward(x, gamma, beta, w, b, matmul_dtype=jnp.float32))
    assert bool(jnp.allclose(out_f32, ref, atol=1e-4, rtol=1e-4)), \
        "resident f32 kernel mismatch vs reference"

    # ---- forced streaming path (column-blocked W + LayerNorm lookahead) -----
    B2, S2, D2 = 2, 256, 256
    x2 = jax.random.normal(k6, (B2, S2, D2), dtype=jnp.float32)
    gamma2 = 1.0 + 0.01 * jax.random.normal(k2, (D2,), dtype=jnp.float32)
    beta2 = 0.01 * jax.random.normal(k3, (D2,), dtype=jnp.float32)
    w2 = jax.random.normal(k4, (D2, D2), dtype=jnp.float32) / jnp.sqrt(D2)
    b2 = 0.01 * jax.random.normal(k5, (D2,), dtype=jnp.float32)

    ref2 = reference_forward(x2, gamma2, beta2, w2, b2)

    out2 = jax.block_until_ready(
        prenorm_forward(x2, gamma2, beta2, w2, b2,
                        matmul_dtype=jnp.bfloat16, tm=64, tn=128))
    assert out2.shape == (B2, S2, D2)
    assert bool(jnp.allclose(out2, ref2, atol=5e-2, rtol=5e-2)), \
        "streaming bf16 kernel mismatch vs reference"

    out2_f32 = jax.block_until_ready(
        prenorm_forward(x2, gamma2, beta2, w2, b2,
                        matmul_dtype=jnp.float32, tm=64, tn=128))
    assert bool(jnp.allclose(out2_f32, ref2, atol=1e-3, rtol=1e-3)), \
        "streaming f32 kernel mismatch vs reference"

    print("KERNEL_OK")
</pallas_src>

<mosaic_0001>
module attributes {stable_mosaic.version = 11 : i64} {
  func.func @_prenorm_resident_kernel(%arg0: i32, %arg1: memref<8x128xf32, #tpu.memory_space<vmem>>, %arg2: memref<1x128xf32, #tpu.memory_space<vmem>>, %arg3: memref<1x128xf32, #tpu.memory_space<vmem>>, %arg4: memref<128x128xbf16, #tpu.memory_space<vmem>>, %arg5: memref<1x128xf32, #tpu.memory_space<vmem>>, %arg6: memref<8x128xf32, #tpu.memory_space<vmem>>) attributes {dimension_semantics = [#tpu.dimension_semantics<parallel>], iteration_bounds = array<i64: 2>, scalar_prefetch = 0 : i64, scratch_operands = 0 : i64, tpu.core_type = #tpu.core_type<tc>, window_params = [{transform_indices = @transform_0, window_bounds = array<i64: 8, 128>}, {pipeline_mode = #tpu.pipeline_mode<synchronous>, transform_indices = @transform_1, window_bounds = array<i64: 1, 128>}, {pipeline_mode = #tpu.pipeline_mode<synchronous>, transform_indices = @transform_2, window_bounds = array<i64: 1, 128>}, {pipeline_mode = #tpu.pipeline_mode<synchronous>, transform_indices = @transform_3, window_bounds = array<i64: 128, 128>}, {pipeline_mode = #tpu.pipeline_mode<synchronous>, transform_indices = @transform_4, window_bounds = array<i64: 1, 128>}, {transform_indices = @transform_5, window_bounds = array<i64: 8, 128>}]} {
    %c0 = arith.constant 0 : index
    %c0_0 = arith.constant 0 : index
    %0 = vector.load %arg1[%c0, %c0_0] : memref<8x128xf32, #tpu.memory_space<vmem>>, vector<8x128xf32>
    %c0_1 = arith.constant 0 : index
    %c0_2 = arith.constant 0 : index
    %1 = vector.load %arg2[%c0_1, %c0_2] : memref<1x128xf32, #tpu.memory_space<vmem>>, vector<1x128xf32>
    %c0_3 = arith.constant 0 : index
    %c0_4 = arith.constant 0 : index
    %2 = vector.load %arg3[%c0_3, %c0_4] : memref<1x128xf32, #tpu.memory_space<vmem>>, vector<1x128xf32>
    %cst = arith.constant dense<0.000000e+00> : vector<8xf32>
    %3 = vector.multi_reduction <add>, %0, %cst [1] : vector<8x128xf32> to vector<8xf32>
    %4 = vector.shape_cast %3 : vector<8xf32> to vector<8x1xf32>
    %cst_5 = arith.constant 1.280000e+02 : f32
    %5 = vector.broadcast %cst_5 : f32 to vector<8x1xf32>
    %6 = arith.divf %4, %5 : vector<8x1xf32>
    %7 = vector.broadcast %6 : vector<8x1xf32> to vector<8x128xf32>
    %8 = arith.subf %0, %7 : vector<8x128xf32>
    %9 = arith.mulf %8, %8 : vector<8x128xf32>
    %cst_6 = arith.constant dense<0.000000e+00> : vector<8xf32>
    %10 = vector.multi_reduction <add>, %9, %cst_6 [1] : vector<8x128xf32> to vector<8xf32>
    %11 = vector.shape_cast %10 : vector<8xf32> to vector<8x1xf32>
    %cst_7 = arith.constant 1.280000e+02 : f32
    %12 = vector.broadcast %cst_7 : f32 to vector<8x1xf32>
    %13 = arith.divf %11, %12 : vector<8x1xf32>
    %cst_8 = arith.constant 9.99999974E-6 : f32
    %14 = vector.broadcast %cst_8 : f32 to vector<8x1xf32>
    %15 = arith.addf %13, %14 : vector<8x1xf32>
    %16 = math.rsqrt %15 : vector<8x1xf32>
    %17 = vector.broadcast %16 : vector<8x1xf32> to vector<8x128xf32>
    %18 = arith.mulf %8, %17 : vector<8x128xf32>
    %19 = vector.broadcast %1 : vector<1x128xf32> to vector<8x128xf32>
    %20 = arith.mulf %18, %19 : vector<8x128xf32>
    %21 = vector.broadcast %2 : vector<1x128xf32> to vector<8x128xf32>
    %22 = arith.addf %20, %21 : vector<8x128xf32>
    %23 = arith.truncf %22 : vector<8x128xf32> to vector<8x128xbf16>
    %c0_9 = arith.constant 0 : index
    %c0_10 = arith.constant 0 : index
    %24 = vector.load %arg4[%c0_9, %c0_10] : memref<128x128xbf16, #tpu.memory_space<vmem>>, vector<128x128xbf16>
    %cst_11 = arith.constant dense<0.000000e+00> : vector<8x128xf32>
    %25 = tpu.matmul %23, %24, %cst_11 {dimension_numbers = #tpu.dot_dimension_numbers<[1], [0], [0], [1], [0, 0, 1, 1], [], []>} : vector<8x128xbf16>, vector<128x128xbf16>, vector<8x128xf32> -> vector<8x128xf32>
    %c0_12 = arith.constant 0 : index
    %c0_13 = arith.constant 0 : index
    %26 = vector.load %arg5[%c0_12, %c0_13] : memref<1x128xf32, #tpu.memory_space<vmem>>, vector<1x128xf32>
    %27 = vector.broadcast %26 : vector<1x128xf32> to vector<8x128xf32>
    %28 = arith.addf %25, %27 : vector<8x128xf32>
    %c0_14 = arith.constant 0 : index
    %c0_15 = arith.constant 0 : index
    %29 = vector.load %arg6[%c0_14, %c0_15] : memref<8x128xf32, #tpu.memory_space<vmem>>, vector<8x128xf32>
    tpu.vector_store %arg6[%c0_14, %c0_15], %28 {strides = array<i32>} : memref<8x128xf32, #tpu.memory_space<vmem>>, vector<8x128xf32>,
    return
  }
  func.func @transform_0(%arg0: i32) -> (i32, i32) {
    %c0_i32 = arith.constant 0 : i32
    %c0_i32_0 = arith.constant 0 : i32
    return %arg0, %c0_i32 : i32, i32
  }
  func.func @transform_1(%arg0: i32) -> (i32, i32) {
    %c0_i32 = arith.constant 0 : i32
    %c0_i32_0 = arith.constant 0 : i32
    %c0_i32_1 = arith.constant 0 : i32
    return %c0_i32, %c0_i32_0 : i32, i32
  }
  func.func @transform_2(%arg0: i32) -> (i32, i32) {
    %c0_i32 = arith.constant 0 : i32
    %c0_i32_0 = arith.constant 0 : i32
    %c0_i32_1 = arith.constant 0 : i32
    return %c0_i32, %c0_i32_0 : i32, i32
  }
  func.func @transform_3(%arg0: i32) -> (i32, i32) {
    %c0_i32 = arith.constant 0 : i32
    %c0_i32_0 = arith.constant 0 : i32
    %c0_i32_1 = arith.constant 0 : i32
    return %c0_i32, %c0_i32_0 : i32, i32
  }
  func.func @transform_4(%arg0: i32) -> (i32, i32) {
    %c0_i32 = arith.constant 0 : i32
    %c0_i32_0 = arith.constant 0 : i32
    %c0_i32_1 = arith.constant 0 : i32
    return %c0_i32, %c0_i32_0 : i32, i32
  }
  func.func @transform_5(%arg0: i32) -> (i32, i32) {
    %c0_i32 = arith.constant 0 : i32
    %c0_i32_0 = arith.constant 0 : i32
    return %arg0, %c0_i32 : i32, i32
  }
}

</mosaic_0001>

<llo_original>
// kernel: tpu_custom_call.1
$region0: #{tpu_custom_call.1}
  #allocation0 [shape = 'u32[]', space=smem, size = 0x4, offset = 0x4, fixed_abs, tag = 'smem constant byte address 0x4 - core index']
  #allocation1 [shape = 'u32[72,128]{1,0:T(1,128)}', space=vmem, size = 0x9000, scoped, tag = 'internal scratch']
  %s0 = inlined_call_operand.hbm [shape: f32[16,128], index: 0, kind: input, shape index: {}]
  %s1 = inlined_call_operand.hbm [shape: f32[1,128], index: 1, kind: input, shape index: {}]
  %s2 = inlined_call_operand.vmem [shape: f32[1,128], index: 2, kind: input, shape index: {}]
  %s3 = inlined_call_operand.hbm [shape: bf16[128,128], index: 3, kind: input, shape index: {}]
  %s4 = inlined_call_operand.vmem [shape: f32[1,128], index: 4, kind: input, shape index: {}]
  %s5 = inlined_call_operand.hbm [shape: f32[16,128], index: 5, kind: output, shape index: {}]
  %s6 = sld [smem:[#allocation0]]
  $region65: #{tpu_custom_call.1} parent=0
    _
  %s8 = ssub.s32 1, %s6
  %s9 = scalar_select 0, %s8, %s6
  $region1: #{tpu_custom_call.1} parent=0
    #allocation2 [shape = 'u8[8192]{0}', space=vmem, size = 0x2000, scoped, tag = 'input window, operand 0']
    #allocation3 [shape = 's32[2]{0}', space=sflag, size = 0x8, scoped, tag = 'scoped memory for tpu_custom_call.1']
    #allocation4 [shape = 's32[2]{0}', space=sflag, size = 0x8, scoped, tag = 'scoped memory for tpu_custom_call.1']
    #allocation5 [shape = 'u8[512]{0}', space=vmem, size = 0x400, scoped, tag = 'input window, operand 1, single buffered']
    #allocation6 [shape = 's32[1]{0}', space=sflag, size = 0x4, scoped, tag = 'scoped memory for tpu_custom_call.1']
    #allocation7 [shape = 'u8[32768]{0}', space=vmem, size = 0x8000, scoped, tag = 'input window, operand 3, single buffered']
    #allocation8 [shape = 'u8[8192]{0}', space=vmem, size = 0x2000, scoped, tag = 'output window, operand 0']
    %10 = vsyncpa [#allocation3], 0
    %s11 = scalar_lea.sflag [#allocation3], 1
    %12 = vsyncpa %s11, 0
    %13 = vsyncpa [#allocation6], 0
    %14 = vsyncpa [#allocation4], 0
    %s15 = scalar_lea.sflag [#allocation4], 1
    %16 = vsyncpa %s15, 0
    loop: start=0, step=1, limit=4
    $region2: #{tpu_custom_call.1} parent=1 // loop_pre_header
      _
    $region3: #{tpu_custom_call.1} parent=1 // loop_header
      %s18 = sphi 0, %s22
      %p19 = scmp.ge.s32.totalorder %s18, 4
      %s28 = sphi 0, %s30
      %s31 = sphi 0, %s28
      %s32 = sphi 0, %s31
      %s48 = sphi 0, %s32
      %s52 = sphi 0, %s52
      %s54 = sphi 0, %s52
      %s55 = sphi 0, %s54
      %s69 = sphi 0, %s55
      %s73 = sphi 0, %s73
      %s75 = sphi 0, %s73
      %s76 = sphi 0, %s75
      %s90 = sphi 0, %s76
      %s94 = sphi 0, %s94
      %s96 = sphi 0, %s94
      %s97 = sphi 0, %s96
      %s111 = sphi 0, %s97
      %s115 = sphi 0, %s115
      %s117 = sphi 0, %s115
      %s118 = sphi 0, %s117
      %s132 = sphi 0, %s118
      %s138 = sphi 0, %s140
      %s141 = sphi 0, %s138
      %s142 = sphi 0, %s141
      %s158 = sphi 0, %s142
    $region4: #{tpu_custom_call.1} parent=1 // loop_header_branch
      %21 = sbr.rel (%p19) target = $region8
    $region5: #{tpu_custom_call.1} parent=1 // loop_body
      %s23 = ssub.s32 %s18, 1
      %s24 = ssub.s32 %s18, 2
      %s25 = sadd.s32 %s18, 1
      %s26 = ssub.s32 %s18, %s25
      %p27 = scmp.eq.s32.totalorder %s26, 0
      %s29 = sadd.s32 %s28, 1
      %s30 = scalar_select %p27, %s28, %s29
      %p33 = pneg %p27
      %p34 = scmp.eq.s32.totalorder %s18, 1
      %p35 = por %p33, %p34
      %p36 = scmp.ne.s32.totalorder %s28, %s31
      %p37 = scmp.eq.s32.totalorder %s18, 0
      %p38 = por %p36, %p37
      %p39 = scmp.ne.s32.totalorder %s28, %s31
      %p40 = scmp.eq.s32.totalorder %s23, 1
      %p41 = por %p39, %p40
      %p42 = scmp.ne.s32.totalorder %s31, %s32
      %p43 = scmp.eq.s32.totalorder %s23, 0
      %p44 = por %p42, %p43
      %p45 = scmp.ne.s32.totalorder %s31, %s32
      %p46 = scmp.eq.s32.totalorder %s24, 1
      %p47 = por %p45, %p46
      %p49 = scmp.ne.s32.totalorder %s32, %s48
      %p50 = scmp.eq.s32.totalorder %s24, 0
      %p51 = por %p49, %p50
      %s53 = sadd.s32 %s52, 1
      %p56 = scmp.eq.s32.totalorder %s18, 1
      %p57 = scmp.ne.s32.totalorder %s52, %s54
      %p58 = scmp.eq.s32.totalorder %s18, 0
      %p59 = por %p57, %p58
      %p60 = scmp.ne.s32.totalorder %s52, %s54
      %p61 = scmp.eq.s32.totalorder %s23, 1
      %p62 = por %p60, %p61
      %p63 = scmp.ne.s32.totalorder %s54, %s55
      %p64 = scmp.eq.s32.totalorder %s23, 0
      %p65 = por %p63, %p64
      %p66 = scmp.ne.s32.totalorder %s54, %s55
      %p67 = scmp.eq.s32.totalorder %s24, 1
      %p68 = por %p66, %p67
      %p70 = scmp.ne.s32.totalorder %s55, %s69
      %p71 = scmp.eq.s32.totalorder %s24, 0
      %p72 = por %p70, %p71
      %s74 = sadd.s32 %s73, 1
      %p77 = scmp.eq.s32.totalorder %s18, 1
      %p78 = scmp.ne.s32.totalorder %s73, %s75
      %p79 = scmp.eq.s32.totalorder %s18, 0
      %p80 = por %p78, %p79
      %p81 = scmp.ne.s32.totalorder %s73, %s75
      %p82 = scmp.eq.s32.totalorder %s23, 1
      %p83 = por %p81, %p82
      %p84 = scmp.ne.s32.totalorder %s75, %s76
      %p85 = scmp.eq.s32.totalorder %s23, 0
      %p86 = por %p84, %p85
      %p87 = scmp.ne.s32.totalorder %s75, %s76
      %p88 = scmp.eq.s32.totalorder %s24, 1
      %p89 = por %p87, %p88
      %p91 = scmp.ne.s32.totalorder %s76, %s90
      %p92 = scmp.eq.s32.totalorder %s24, 0
      %p93 = por %p91, %p92
      %s95 = sadd.s32 %s94, 1
      %p98 = scmp.eq.s32.totalorder %s18, 1
      %p99 = scmp.ne.s32.totalorder %s94, %s96
      %p100 = scmp.eq.s32.totalorder %s18, 0
      %p101 = por %p99, %p100
      %p102 = scmp.ne.s32.totalorder %s94, %s96
      %p103 = scmp.eq.s32.totalorder %s23, 1
      %p104 = por %p102, %p103
      %p105 = scmp.ne.s32.totalorder %s96, %s97
      %p106 = scmp.eq.s32.totalorder %s23, 0
      %p107 = por %p105, %p106
      %p108 = scmp.ne.s32.totalorder %s96, %s97
      %p109 = scmp.eq.s32.totalorder %s24, 1
      %p110 = por %p108, %p109
      %p112 = scmp.ne.s32.totalorder %s97, %s111
      %p113 = scmp.eq.s32.totalorder %s24, 0
      %p114 = por %p112, %p113
      %s116 = sadd.s32 %s115, 1
      %p119 = scmp.eq.s32.totalorder %s18, 1
      %p120 = scmp.ne.s32.totalorder %s115, %s117
      %p121 = scmp.eq.s32.totalorder %s18, 0
      %p122 = por %p120, %p121
      %p123 = scmp.ne.s32.totalorder %s115, %s117
      %p124 = scmp.eq.s32.totalorder %s23, 1
      %p125 = por %p123, %p124
      %p126 = scmp.ne.s32.totalorder %s117, %s118
      %p127 = scmp.eq.s32.totalorder %s23, 0
      %p128 = por %p126, %p127
      %p129 = scmp.ne.s32.totalorder %s117, %s118
      %p130 = scmp.eq.s32.totalorder %s24, 1
      %p131 = por %p129, %p130
      %p133 = scmp.ne.s32.totalorder %s118, %s132
      %p134 = scmp.eq.s32.totalorder %s24, 0
      %p135 = por %p133, %p134
      %s136 = ssub.s32 %s18, %s25
      %p137 = scmp.eq.s32.totalorder %s136, 0
      %s139 = sadd.s32 %s138, 1
      %s140 = scalar_select %p137, %s138, %s139
      %p143 = pneg %p137
      %p144 = scmp.eq.s32.totalorder %s18, 1
      %p145 = por %p143, %p144
      %p146 = scmp.ne.s32.totalorder %s138, %s141
      %p147 = scmp.eq.s32.totalorder %s18, 0
      %p148 = por %p146, %p147
      %p149 = scmp.ne.s32.totalorder %s138, %s141
      %p150 = scmp.eq.s32.totalorder %s23, 1
      %p151 = por %p149, %p150
      %p152 = scmp.ne.s32.totalorder %s141, %s142
      %p153 = scmp.eq.s32.totalorder %s23, 0
      %p154 = por %p152, %p153
      %p155 = scmp.ne.s32.totalorder %s141, %s142
      %p156 = scmp.eq.s32.totalorder %s24, 1
      %p157 = por %p155, %p156
      %p159 = scmp.ne.s32.totalorder %s142, %s158
      %p160 = scmp.eq.s32.totalorder %s24, 0
      %p161 = por %p159, %p160
      %p162 = scmp.le.s32.totalorder 1, %s18
      %p163 = scmp.lt.s32.totalorder %s18, 3
      %p164 = pnand %p162, %p163
      %p165 = pneg %p164
      // Predicated region
      $region9: #{tpu_custom_call.1} parent=5 // pred_check
        _
      $region10: #{tpu_custom_call.1} parent=5 // pred_check_branch
        %167 = sbr.rel (%p164) target = $region12
      $region11: #{tpu_custom_call.1} parent=5 // pred_region
        %s168 = ssub.s32 %s18, 1
        // Predicated region
        $region13: #{tpu_custom_call.1} parent=11 // pred_check
          %p169 = pneg %p65
        $region14: #{tpu_custom_call.1} parent=11 // pred_check_branch
          %171 = sbr.rel (%p169) target = $region16
        $region15: #{tpu_custom_call.1} parent=11 // pred_region
          %173 = vsyncadd [#allocation6], 0
          %s175 = sshll.u32 %s1, 4
          %s176 = int_to_ptr.hbm [resolvable:$true] %s175
          %s177 = sshll.u32 [#allocation5], 4
          %s178 = int_to_ptr.vmem [resolvable:$true] %s177
          %180 = dma.hbm_to_vmem [thread:$0]  %s176, 16, %s178, [#allocation6]
        $region16: #{tpu_custom_call.1} parent=11 // pred_fallthru
          _
        // Predicated region
        $region17: #{tpu_custom_call.1} parent=11 // pred_check
          %p181 = pneg %p86
        $region18: #{tpu_custom_call.1} parent=11 // pred_check_branch
          %183 = sbr.rel (%p181) target = $region20
        $region19: #{tpu_custom_call.1} parent=11 // pred_region
          _
        $region20: #{tpu_custom_call.1} parent=11 // pred_fallthru
          _
        // Predicated region
        $region21: #{tpu_custom_call.1} parent=11 // pred_check
          %p184 = pneg %p107
        $region22: #{tpu_custom_call.1} parent=11 // pred_check_branch
          %186 = sbr.rel (%p184) target = $region24
        $region23: #{tpu_custom_call.1} parent=11 // pred_region
          %188 = vsyncadd [#allocation6], 0
          %s189 = sshll.u32 %s3, 4
          %s190 = int_to_ptr.hbm [resolvable:$true] %s189
          %s191 = sshll.u32 [#allocation7], 4
          %s192 = int_to_ptr.vmem [resolvable:$true] %s191
          %197 = dma.hbm_to_vmem [thread:$0]  %s190, 1024, %s192, [#allocation6], 64, 64, 4
        $region24: #{tpu_custom_call.1} parent=11 // pred_fallthru
          _
        // Predicated region
        $region25: #{tpu_custom_call.1} parent=11 // pred_check
          %p198 = pneg %p128
        $region26: #{tpu_custom_call.1} parent=11 // pred_check_branch
          %200 = sbr.rel (%p198) target = $region28
        $region27: #{tpu_custom_call.1} parent=11 // pred_region
          _
        $region28: #{tpu_custom_call.1} parent=11 // pred_fallthru
          _
      $region12: #{tpu_custom_call.1} parent=5 // pred_fallthru
        _
      %p201 = scmp.lt.s32.totalorder %s18, 2
      // Predicated region
      $region29: #{tpu_custom_call.1} parent=5 // pred_check
        %p202 = pneg %p201
      $region30: #{tpu_custom_call.1} parent=5 // pred_check_branch
        %204 = sbr.rel (%p202) target = $region32
      $region31: #{tpu_custom_call.1} parent=5 // pred_region
        // Predicated region
        $region33: #{tpu_custom_call.1} parent=31 // pred_check
          %p205 = pneg %p38
        $region34: #{tpu_custom_call.1} parent=31 // pred_check_branch
          %207 = sbr.rel (%p205) target = $region36
        $region35: #{tpu_custom_call.1} parent=31 // pred_region
          %s208 = sand.u32 %s28, 1
          %s209 = scalar_lea.sflag [#allocation3], %s208
          %s210 = sand.u32 %s28, 1
          %s211 = smul.addr %s210, 8
          %s212 = scalar_lea.vmem [#allocation2], %s211
          %214 = vsyncadd %s209, 0
          %s215 = smul.addr %s18, 8
          %s216 = scalar_lea.hbm %s0, %s215
          %s218 = sshll.u32 %s216, 4
          %s219 = int_to_ptr.hbm [resolvable:$true] %s218
          %s220 = sshll.u32 %s212, 4
          %s221 = int_to_ptr.vmem [resolvable:$true] %s220
          %223 = dma.hbm_to_vmem [thread:$0]  %s219, 128, %s221, %s209
        $region36: #{tpu_custom_call.1} parent=31 // pred_fallthru
          _
      $region32: #{tpu_custom_call.1} parent=5 // pred_fallthru
        _
      %p224 = scmp.le.s32.totalorder 1, %s18
      %p225 = scmp.lt.s32.totalorder %s18, 3
      %p226 = pnand %p224, %p225
      %p227 = pneg %p226
      // Predicated region
      $region37: #{tpu_custom_call.1} parent=5 // pred_check
        _
      $region38: #{tpu_custom_call.1} parent=5 // pred_check_branch
        %229 = sbr.rel (%p226) target = $region40
      $region39: #{tpu_custom_call.1} parent=5 // pred_region
        %s230 = ssub.s32 %s18, 1
        %s231 = sand.u32 %s31, 1
        %s232 = scalar_lea.sflag [#allocation3], %s231
        %s233 = sand.u32 %s31, 1
        %s234 = smul.addr %s233, 8
        %s235 = scalar_lea.vmem [#allocation2], %s234
        // Predicated region
        $region41: #{tpu_custom_call.1} parent=39 // pred_check
          %p236 = pneg %p44
        $region42: #{tpu_custom_call.1} parent=39 // pred_check_branch
          %238 = sbr.rel (%p236) target = $region44
        $region43: #{tpu_custom_call.1} parent=39 // pred_region
          %240 = dma.done %s232, 128
        $region44: #{tpu_custom_call.1} parent=39 // pred_fallthru
          _
        // Predicated region
        $region45: #{tpu_custom_call.1} parent=39 // pred_check
          %p241 = pneg %p65
        $region46: #{tpu_custom_call.1} parent=39 // pred_check_branch
          %243 = sbr.rel (%p241) target = $region48
        $region47: #{tpu_custom_call.1} parent=39 // pred_region
          %245 = dma.done [#allocation6], 16
        $region48: #{tpu_custom_call.1} parent=39 // pred_fallthru
          _
        // Predicated region
        $region49: #{tpu_custom_call.1} parent=39 // pred_check
          %p246 = pneg %p107
        $region50: #{tpu_custom_call.1} parent=39 // pred_check_branch
          %248 = sbr.rel (%p246) target = $region52
        $region51: #{tpu_custom_call.1} parent=39 // pred_region
          %250 = dma.done [#allocation6], 1024
        $region52: #{tpu_custom_call.1} parent=39 // pred_fallthru
          _
        %s251 = sand.u32 %s31, 1
        %s252 = scalar_lea.sflag [#allocation3], %s251
        %s253 = sand.u32 %s31, 1
        %s254 = smul.addr %s253, 8
        %s255 = scalar_lea.vmem [#allocation2], %s254
        %p256 = pneg %p44
        %p257 = pneg %p41
        %p258 = pneg %p65
        %p259 = pneg %p62
        %p260 = pneg %p86
        %p261 = pneg %p83
        %p262 = pneg %p107
        %p263 = pneg %p104
        %p264 = pneg %p128
        %p265 = pneg %p125
        %p266 = pneg %p154
        %p267 = pneg %p151
        %s268 = sand.u32 %s141, 1
        %s269 = scalar_lea.sflag [#allocation4], %s268
        %s270 = sand.u32 %s141, 1
        %s271 = smul.addr %s270, 8
        %s272 = scalar_lea.vmem [#allocation8], %s271
        %v273 = vld [vmem:[%s235] sm:$0xff]
        %v274 = vld [vmem:[#allocation5] sm:$0x1]
        %v275 = vld [vmem:[%s2] sm:$0x1]
        %276 = vadd.xlane.f32.xlu0 %v273
        %v277 = vpop.xlane.xlu0 %276
        %v278 = vrcp.pop 128.0
        %v279 = vmul.f32 128.0, %v278
        %v280 = vsub.f32 1.0, %v279
        %v281 = vmul.f32 %v278, %v280
        %v282 = vadd.f32 %v278, %v281
        %vm283 = vweird.f32 %v278
        %v284 = vsel %vm283, %v278, %v282
        %v285 = vmul.f32 %v277, %v284
        %v286 = vsub.f32 %v273, %v285
        %v287 = vmul.f32 %v286, %v286
        %288 = vadd.xlane.f32.xlu0 %v287
        %v289 = vpop.xlane.xlu0 %288
        %v290 = vmul.f32 %v289, %v284
        %v291 = vadd.f32 %v290, 1e-05
        %v292 = vrsqrt.pop %v291
        %v293 = vmul.f32 %v292, %v291
        %v294 = vmul.f32 %v293, %v292
        %v295 = vmul.f32 0.5, %v294
        %v296 = vsub.f32 1.5, %v295
        %v297 = vmul.f32 %v292, %v296
        %vm298 = vweird.f32 %v291
        %vm299 = vweird.f32 %v292
        %vm300 = vmor %vm298, %vm299
        %v301 = vsel %vm300, %v292, %v297
        %v302 = vmul.f32 %v286, %v301
        %v304 = vperm.slane %v274, 0
        %v306 = vmul.f32 %v302, %v304
        %v308 = vperm.slane %v275, 0
        %v310 = vadd.f32 %v306, %v308
        %v311 = vpack.c.bf16 %v310, %v310
        %v312 = vld [vmem:[#allocation7] sm:$0xf]
        %v313 = vld [vmem:[#allocation7 + $0x4] sm:$0xf]
        %v314 = vld [vmem:[#allocation7 + $0x8] sm:$0xf]
        %v315 = vld [vmem:[#allocation7 + $0xc] sm:$0xf]
        %v316 = vld [vmem:[#allocation7 + $0x10] sm:$0xf]
        %v317 = vld [vmem:[#allocation7 + $0x14] sm:$0xf]
        %v318 = vld [vmem:[#allocation7 + $0x18] sm:$0xf]
        %v319 = vld [vmem:[#allocation7 + $0x1c] sm:$0xf]
        %v320 = vld [vmem:[#allocation7 + $0x20] sm:$0xf]
        %v321 = vld [vmem:[#allocation7 + $0x24] sm:$0xf]
        %v322 = vld [vmem:[#allocation7 + $0x28] sm:$0xf]
        %v323 = vld [vmem:[#allocation7 + $0x2c] sm:$0xf]
        %v324 = vld [vmem:[#allocation7 + $0x30] sm:$0xf]
        %v325 = vld [vmem:[#allocation7 + $0x34] sm:$0xf]
        %v326 = vld [vmem:[#allocation7 + $0x38] sm:$0xf]
        %v327 = vld [vmem:[#allocation7 + $0x3c] sm:$0xf]
        %v328 = vld [vmem:[%s4] sm:$0x1]
        %v330 = vperm.slane %v328, 0
        %v348 = vunpack.c.l.b16 %v312
        %v349 = vunpack.c.l.b16 %v313
        %v350 = vunpack.c.l.b16 %v314
        %v351 = vunpack.c.l.b16 %v315
        %v352 = vunpack.c.l.b16 %v316
        %v353 = vunpack.c.l.b16 %v317
        %v354 = vunpack.c.l.b16 %v318
        %v355 = vunpack.c.l.b16 %v319
        %v356 = vunpack.c.l.b16 %v320
        %v357 = vunpack.c.l.b16 %v321
        %v358 = vunpack.c.l.b16 %v322
        %v359 = vunpack.c.l.b16 %v323
        %v360 = vunpack.c.l.b16 %v324
        %v361 = vunpack.c.l.b16 %v325
        %v362 = vunpack.c.l.b16 %v326
        %v363 = vunpack.c.l.b16 %v327
        %v364 = vpack.c.b16 %v349, %v348
        %v365 = vpack.c.b16 %v351, %v350
        %v366 = vpack.c.b16 %v353, %v352
        %v367 = vpack.c.b16 %v355, %v354
        %v368 = vpack.c.b16 %v357, %v356
        %v369 = vpack.c.b16 %v359, %v358
        %v370 = vpack.c.b16 %v361, %v360
        %v371 = vpack.c.b16 %v363, %v362
        %380 = vmatpush.bf16.msra.mxu0 %v371
        %381 = vmatpush.bf16.msra.mxu0 %v370
        %382 = vmatpush.bf16.msra.mxu0 %v369
        %383 = vmatpush.bf16.msra.mxu0 %v368
        %384 = vmatpush.bf16.msra.mxu0 %v367
        %385 = vmatpush.bf16.msra.mxu0 %v366
        %386 = vmatpush.bf16.msra.mxu0 %v365
        %387 = vmatpush.bf16.msra.mxu0 %v364
        %388 = vmatmul.bf16.gmra.mxu0 %v311
        %v389 = vpop.f32.mrf.mxu0
        %v390 = vadd.f32 %v330, %v389
        %v391 = vpop.f32.mrf.mxu0
        %392 = vdwg.mxu0
        %393 = vst [vmem:[%s272] sm:$0xff] %v390
        %s394 = sand.u32 %s141, 1
        %s395 = scalar_lea.sflag [#allocation4], %s394
        %s396 = sand.u32 %s141, 1
        %s397 = smul.addr %s396, 8
        %s398 = scalar_lea.vmem [#allocation8], %s397
        // Predicated region
        $region53: #{tpu_custom_call.1} parent=39 // pred_check
          %p399 = pneg %p151
        $region54: #{tpu_custom_call.1} parent=39 // pred_check_branch
          %401 = sbr.rel (%p399) target = $region56
        $region55: #{tpu_custom_call.1} parent=39 // pred_region
          %403 = vsyncadd %s395, 0
          %s404 = smul.addr %s23, 8
          %s405 = scalar_lea.hbm %s5, %s404
          %s407 = sshll.u32 %s398, 4
          %s408 = int_to_ptr.vmem [resolvable:$true] %s407
          %s409 = sshll.u32 %s405, 4
          %s410 = int_to_ptr.hbm [resolvable:$true] %s409
          %412 = dma.vmem_to_hbm [thread:$0]  %s408, 128, %s410, %s395
        $region56: #{tpu_custom_call.1} parent=39 // pred_fallthru
          _
      $region40: #{tpu_custom_call.1} parent=5 // pred_fallthru
        _
      %p413 = scmp.le.s32.totalorder 2, %s18
      // Predicated region
      $region57: #{tpu_custom_call.1} parent=5 // pred_check
        %p414 = pneg %p413
      $region58: #{tpu_custom_call.1} parent=5 // pred_check_branch
        %416 = sbr.rel (%p414) target = $region60
      $region59: #{tpu_custom_call.1} parent=5 // pred_region
        %s417 = ssub.s32 %s18, 2
        // Predicated region
        $region61: #{tpu_custom_call.1} parent=59 // pred_check
          %p418 = pneg %p157
        $region62: #{tpu_custom_call.1} parent=59 // pred_check_branch
          %420 = sbr.rel (%p418) target = $region64
        $region63: #{tpu_custom_call.1} parent=59 // pred_region
          %s421 = sand.u32 %s142, 1
          %s422 = scalar_lea.sflag [#allocation4], %s421
          %s423 = sand.u32 %s142, 1
          %s424 = smul.addr %s423, 8
          %s425 = scalar_lea.vmem [#allocation8], %s424
          %427 = dma.done %s422, 128
        $region64: #{tpu_custom_call.1} parent=59 // pred_fallthru
          _
      $region60: #{tpu_custom_call.1} parent=5 // pred_fallthru
        _
    $region6: #{tpu_custom_call.1} parent=1 // loop_footer
      %s22 = sadd.s32 1, %s18
    $region7: #{tpu_custom_call.1} parent=1 // loop_footer_branch
      %17 = sbr.rel target = $region3
    $region8: #{tpu_custom_call.1} parent=1 // loop_exit
      _
    %428 = vsyncpa [#allocation3], 1
    %s429 = scalar_lea.sflag [#allocation3], 1
    %430 = vsyncpa %s429, 1
    %431 = vsyncpa [#allocation6], 1
    %432 = vsyncpa [#allocation4], 1
    %s433 = scalar_lea.sflag [#allocation4], 1
    %434 = vsyncpa %s433, 1

</llo_original>
